<compile_context>
chip_gen: v7x
topology: tpu7x:2x2x1
jax: 0.10.0
libtpu: 0.0.40
codegen_flags: <defaults>
</compile_context>

<pallas_src>
import jax
import jax.numpy as jnp
from jax.experimental import pallas as pl
from jax.experimental.pallas import tpu as pltpu


# ----------------------------- Pallas kernel ---------------------------------
def early_fusion_kernel(x_ref, w_eff_ref, b_eff_ref, *rest):
    """Streaming spatial sum -> folded (conv+pool+encoder) linear -> ReLU MLP -> score.

    Grid: (B//b_tile, HW//hw_tile); axis 0 'parallel', axis 1 'arbitrary' (reduction).

    x_ref    : (b_tile, Cin, hw_tile)   batch block, lane-dense spatial tile (bf16/f32)
    w_eff_ref: (Cin, E), b_eff_ref: (1, E)   folded conv + mean + encoder linear
    rest     : [w1, b1, ..., w_last, b_last, out_ref (b_tile,1,1), acc_ref (b_tile,Cin)]
    """
    fc_refs = rest[:-2]
    out_ref = rest[-2]
    acc_ref = rest[-1]

    k = pl.program_id(1)

    @pl.when(k == 0)
    def _():
        acc_ref[...] = jnp.zeros_like(acc_ref)

    # Streaming reduction over the lane (spatial) axis.  Upcast to f32 before
    # the add (mandatory on v5e, and keeps the pooled mean accurate).
    acc_ref[...] += jnp.sum(x_ref[...].astype(jnp.float32), axis=-1)   # (bt, Cin)

    @pl.when(k == pl.num_programs(1) - 1)
    def _():
        # acc holds the per-channel sum over the full H*W.  W_eff already folds
        # the 1x1 conv, the 1/(H*W) mean, and the encoder's first Linear.
        sum_x = acc_ref[...]                                           # (bt, Cin)
        h = jnp.maximum(
            jnp.dot(sum_x, w_eff_ref[...], preferred_element_type=jnp.float32)
            + b_eff_ref[...],
            0.0,
        )                                                              # (bt, E)

        # Hidden FC layers with ReLU.
        n_fc = len(fc_refs) // 2
        for i in range(n_fc - 1):
            w = fc_refs[2 * i][...]
            b = fc_refs[2 * i + 1][...]
            h = jnp.maximum(
                jnp.dot(h, w, preferred_element_type=jnp.float32) + b, 0.0
            )

        # Final score layer (no activation).
        w_last = fc_refs[-2][...]
        b_last = fc_refs[-1][...]
        score = jnp.dot(h, w_last, preferred_element_type=jnp.float32) + b_last
        out_ref[...] = score.reshape(out_ref.shape)


# ------------------------------ tile selection --------------------------------
def _choose_tiles(B, cin, hw, itemsize, block_budget_bytes=4 << 20, bt_cap=128):
    """Byte-budgeted (b_tile, hw_tile).

    hw_tile: largest multiple of 128 dividing HW whose single-row slab
             (Cin * hw_tile * itemsize) fits the budget; full HW if HW % 128 != 0
             (BlockSpec last-dim constraint).
    b_tile : largest divisor of B keeping the block within the budget (capped at
             128 rows -- MXU M saturates and the accumulator stays small), with a
             preference for >= 2 batch blocks so v7x megacore has work per core.
    """
    if hw % 128 != 0:
        hw_tile = hw                            # must equal the full array dim
    else:
        max_elems = max(128, (block_budget_bytes // (cin * itemsize)) // 128 * 128)
        hw_tile = hw
        while hw_tile > max_elems or hw % hw_tile != 0:
            hw_tile -= 128

    row_bytes = cin * hw_tile * itemsize
    max_rows = max(1, block_budget_bytes // row_bytes)
    bt = min(B, max_rows, bt_cap)
    while B % bt != 0:
        bt -= 1
    # Keep >= 2 batch blocks when it doesn't hurt MXU row utilization much
    # (v7x has 2 TensorCores splitting the 'parallel' batch axis).
    if B // bt == 1 and bt >= 16 and bt % 2 == 0:
        bt //= 2
    return bt, hw_tile


# ------------------------------ wrapper ---------------------------------------
def early_fusion_forward(x, params, *, stream_dtype=jnp.bfloat16,
                         block_budget_bytes=4 << 20, b_tile=None, hw_tile=None):
    """x: (B, num_frames, 3, H, W) float32  ->  score (B, 1) float32."""
    B, F, C, H, W = x.shape
    assert C == 3
    cin = F * C
    hw = H * W

    wc, bc, wp, bp, fc_params = params
    # Fold 1x1 conv + 1/(H*W) mean + encoder first Linear into one GEMM.
    # (valid because the synthetic encoder begins with global average pooling,
    #  which commutes with the pointwise conv)
    w_eff = (wc @ wp) * (1.0 / hw)                       # (Cin, E)
    b_eff = bc @ wp + bp                                 # (1, E)

    # Free, contiguous reshape of the NCHW input: (B, F*3, H*W).  Channel order
    # (frame-major, rgb-minor) matches torch's reshape(B, 3*F, H, W).
    # Streaming dtype cast (default bf16) halves HBM bytes for this mem-bound kernel.
    x_flat = x.reshape(B, cin, hw).astype(stream_dtype)

    itemsize = jnp.dtype(stream_dtype).itemsize
    auto_bt, auto_hw = _choose_tiles(B, cin, hw, itemsize, block_budget_bytes)
    if b_tile is None:
        b_tile = auto_bt
    if hw_tile is None:
        hw_tile = auto_hw
    assert B % b_tile == 0 and hw % hw_tile == 0, (B, b_tile, hw, hw_tile)
    n_b, n_k = B // b_tile, hw // hw_tile

    flat_fc = [a for wb in fc_params for a in wb]
    weight_inputs = (w_eff, b_eff, *flat_fc)

    def _weight_spec(shape):
        # Small VMEM-resident weight block; constant index -> fetched once.
        return pl.BlockSpec(shape, lambda b, k: (0,) * len(shape))

    # Explicit scoped-VMEM limit: 32 MiB covers 2x double-buffered x blocks at a
    # 4 MiB budget plus weights on every generation (v7x: 64 MiB physical/TC).
    x_block_bytes = b_tile * cin * hw_tile * itemsize
    weight_bytes = sum(int(a.size) * 4 for a in weight_inputs)
    needed = 2 * x_block_bytes + weight_bytes + b_tile * cin * 4 + (1 << 20)
    # TODO(synk): if HW % 128 != 0 and a single row exceeds ~28 MiB, this may
    # still not fit v7x's per-TC VMEM; such shapes would need a padded spatial tile.
    vmem_limit = int(min(max(32 << 20, needed), 120 << 20))

    grid_spec = pltpu.PrefetchScalarGridSpec(
        num_scalar_prefetch=0,
        grid=(n_b, n_k),
        in_specs=[
            # Lane-dense spatial tile of a batch block; spatial axis is reduced.
            pl.BlockSpec((b_tile, cin, hw_tile), lambda b, k: (b, 0, k)),
            *[_weight_spec(a.shape) for a in weight_inputs],
        ],
        # 3-D output so the block's last two dims equal the full array dims;
        # each batch block is written once, at its last reduction step.
        out_specs=pl.BlockSpec((b_tile, 1, 1), lambda b, k: (b, 0, 0)),
        scratch_shapes=[pltpu.VMEM((b_tile, cin), jnp.float32)],
    )

    out = pl.pallas_call(
        early_fusion_kernel,
        grid_spec=grid_spec,
        out_shape=jax.ShapeDtypeStruct((B, 1, 1), jnp.float32),
        compiler_params=pltpu.CompilerParams(
            dimension_semantics=("parallel", "arbitrary"),
            vmem_limit_bytes=vmem_limit,
        ),
    )(x_flat, *weight_inputs)
    return out.reshape(B, 1)


# -------------------------- deterministic params ------------------------------
def init_params(num_frames, embedding_size, hidden_sizes, key):
    cin = 3 * num_frames
    ks = jax.random.split(key, 4 + 2 * (len(hidden_sizes) + 1))
    k_it = iter(ks)

    def lin(kin, shape, fan_in):
        return jax.random.normal(kin, shape, jnp.float32) / jnp.sqrt(fan_in)

    # 1x1 conv stored as (Cin, 3) so out = x @ wc + bc  (== torch x @ W.T + b).
    wc = lin(next(k_it), (cin, 3), cin)
    bc = lin(next(k_it), (1, 3), cin)
    # synthetic pretrained encoder: (3 -> embedding_size)
    wp = lin(next(k_it), (3, embedding_size), 3)
    bp = lin(next(k_it), (1, embedding_size), 3)

    fc_params = []
    prev = embedding_size
    for hs in hidden_sizes:
        w = lin(next(k_it), (prev, hs), prev)
        b = lin(next(k_it), (1, hs), prev)
        fc_params.append((w, b))
        prev = hs
    w = lin(next(k_it), (prev, 1), prev)
    b = lin(next(k_it), (1, 1), prev)
    fc_params.append((w, b))

    return wc, bc, wp, bp, fc_params


# ------------------------------ pure-JAX reference ----------------------------
def reference_forward(x, params):
    """Independent formulation: conv first, then pool (original op order)."""
    B, F, C, H, W = x.shape
    cin = F * C
    wc, bc, wp, bp, fc_params = params
    xf = jnp.transpose(x, (0, 3, 4, 1, 2)).reshape(B, H * W, cin)
    conv = jnp.einsum("bpc,co->bpo", xf, wc) + bc
    pooled = jnp.mean(conv, axis=1)
    h = jax.nn.relu(pooled @ wp + bp)
    for w, b in fc_params[:-1]:
        h = jax.nn.relu(h @ w + b)
    w, b = fc_params[-1]
    return h @ w + b


# ----------------------------------- main --------------------------------------
if __name__ == "__main__":
    B, num_frames, H, W = 2, 4, 16, 16
    embedding_size = 32
    hidden_sizes = (32, 16)

    key = jax.random.PRNGKey(0)
    k_x, k_p = jax.random.split(key)
    x = jax.random.normal(k_x, (B, num_frames, 3, H, W), jnp.float32)
    params = init_params(num_frames, embedding_size, hidden_sizes, k_p)

    # 1) Default config: bf16 streaming + auto byte-budgeted tiles
    #    (here: b_tile=B, hw_tile=HW -> single grid step per batch block).
    score_bf16 = jax.block_until_ready(early_fusion_forward(x, params))

    # 2) f32 streaming with forced small tiles (b_tile=1, hw_tile=128) to
    #    exercise the streaming-accumulator path and multiple batch blocks.
    score_f32 = jax.block_until_ready(
        early_fusion_forward(x, params, stream_dtype=jnp.float32,
                             b_tile=1, hw_tile=128)
    )

    ref = reference_forward(x, params)
    # Reference on the bf16-quantized input (isolates op-order error from the
    # intentional bf16 streaming quantization).
    x_q = x.astype(jnp.bfloat16).astype(jnp.float32)
    ref_q = reference_forward(x_q, params)

    assert score_bf16.shape == (B, 1) and score_f32.shape == (B, 1)
    assert jnp.allclose(score_f32, ref, atol=1e-4, rtol=1e-4), (score_f32, ref)
    assert jnp.allclose(score_bf16, ref_q, atol=1e-3, rtol=1e-3), (score_bf16, ref_q)
    assert jnp.allclose(score_bf16, ref, atol=2e-2, rtol=2e-2), (score_bf16, ref)

    print("KERNEL_OK")
</pallas_src>

<mosaic_0001>
module attributes {stable_mosaic.version = 11 : i64} {
  func.func @early_fusion_kernel(%arg0: i32, %arg1: i32, %arg2: memref<2x12x256xbf16, #tpu.memory_space<vmem>>, %arg3: memref<12x32xf32, #tpu.memory_space<vmem>>, %arg4: memref<1x32xf32, #tpu.memory_space<vmem>>, %arg5: memref<32x32xf32, #tpu.memory_space<vmem>>, %arg6: memref<1x32xf32, #tpu.memory_space<vmem>>, %arg7: memref<32x16xf32, #tpu.memory_space<vmem>>, %arg8: memref<1x16xf32, #tpu.memory_space<vmem>>, %arg9: memref<16x1xf32, #tpu.memory_space<vmem>>, %arg10: memref<1x1xf32, #tpu.memory_space<vmem>>, %arg11: memref<2x1x1xf32, #tpu.memory_space<vmem>>, %arg12: memref<2x12xf32, #tpu.memory_space<vmem>>) attributes {dimension_semantics = [#tpu.dimension_semantics<parallel>, #tpu.dimension_semantics<arbitrary>], iteration_bounds = array<i64: 1, 1>, scalar_prefetch = 0 : i64, scratch_operands = 1 : i64, tpu.core_type = #tpu.core_type<tc>, window_params = [{transform_indices = @transform_0, window_bounds = array<i64: 2, 12, 256>}, {pipeline_mode = #tpu.pipeline_mode<synchronous>, transform_indices = @transform_1, window_bounds = array<i64: 12, 32>}, {pipeline_mode = #tpu.pipeline_mode<synchronous>, transform_indices = @transform_2, window_bounds = array<i64: 1, 32>}, {pipeline_mode = #tpu.pipeline_mode<synchronous>, transform_indices = @transform_3, window_bounds = array<i64: 32, 32>}, {pipeline_mode = #tpu.pipeline_mode<synchronous>, transform_indices = @transform_4, window_bounds = array<i64: 1, 32>}, {pipeline_mode = #tpu.pipeline_mode<synchronous>, transform_indices = @transform_5, window_bounds = array<i64: 32, 16>}, {pipeline_mode = #tpu.pipeline_mode<synchronous>, transform_indices = @transform_6, window_bounds = array<i64: 1, 16>}, {pipeline_mode = #tpu.pipeline_mode<synchronous>, transform_indices = @transform_7, window_bounds = array<i64: 16, 1>}, {pipeline_mode = #tpu.pipeline_mode<synchronous>, transform_indices = @transform_8, window_bounds = array<i64: 1, 1>}, {transform_indices = @transform_9, window_bounds = array<i64: 2, 1, 1>}]} {
    %c0_i32 = arith.constant 0 : i32
    %0 = arith.cmpi eq, %arg1, %c0_i32 : i32
    %1 = arith.extui %0 : i1 to i32
    %c0_i32_0 = arith.constant 0 : i32
    %2 = arith.cmpi ne, %1, %c0_i32_0 : i32
    scf.if %2 {
      %cst_9 = arith.constant 0.000000e+00 : f32
      %12 = vector.broadcast %cst_9 : f32 to vector<2x12xf32>
      %c0_10 = arith.constant 0 : index
      %c0_11 = arith.constant 0 : index
      %13 = vector.load %arg12[%c0_10, %c0_11] : memref<2x12xf32, #tpu.memory_space<vmem>>, vector<2x12xf32>
      tpu.vector_store %arg12[%c0_10, %c0_11], %12 {strides = array<i32>} : memref<2x12xf32, #tpu.memory_space<vmem>>, vector<2x12xf32>,
    } else {
    }
    %c0 = arith.constant 0 : index
    %c0_1 = arith.constant 0 : index
    %3 = vector.load %arg12[%c0, %c0_1] : memref<2x12xf32, #tpu.memory_space<vmem>>, vector<2x12xf32>
    %c0_2 = arith.constant 0 : index
    %c0_3 = arith.constant 0 : index
    %c0_4 = arith.constant 0 : index
    %4 = vector.load %arg2[%c0_2, %c0_3, %c0_4] : memref<2x12x256xbf16, #tpu.memory_space<vmem>>, vector<2x12x256xbf16>
    %5 = arith.extf %4 : vector<2x12x256xbf16> to vector<2x12x256xf32>
    %cst = arith.constant dense<0.000000e+00> : vector<2x12xf32>
    %6 = vector.multi_reduction <add>, %5, %cst [2] : vector<2x12x256xf32> to vector<2x12xf32>
    %7 = arith.addf %3, %6 : vector<2x12xf32>
    %c0_5 = arith.constant 0 : index
    %c0_6 = arith.constant 0 : index
    %8 = vector.load %arg12[%c0_5, %c0_6] : memref<2x12xf32, #tpu.memory_space<vmem>>, vector<2x12xf32>
    tpu.vector_store %arg12[%c0_5, %c0_6], %7 {strides = array<i32>} : memref<2x12xf32, #tpu.memory_space<vmem>>, vector<2x12xf32>,
    %c0_i32_7 = arith.constant 0 : i32
    %9 = arith.cmpi eq, %arg1, %c0_i32_7 : i32
    %10 = arith.extui %9 : i1 to i32
    %c0_i32_8 = arith.constant 0 : i32
    %11 = arith.cmpi ne, %10, %c0_i32_8 : i32
    scf.if %11 {
      %c0_9 = arith.constant 0 : index
      %c0_10 = arith.constant 0 : index
      %12 = vector.load %arg12[%c0_9, %c0_10] : memref<2x12xf32, #tpu.memory_space<vmem>>, vector<2x12xf32>
      %c0_11 = arith.constant 0 : index
      %c0_12 = arith.constant 0 : index
      %13 = vector.load %arg3[%c0_11, %c0_12] : memref<12x32xf32, #tpu.memory_space<vmem>>, vector<12x32xf32>
      %cst_13 = arith.constant dense<0.000000e+00> : vector<2x32xf32>
      %14 = tpu.matmul %12, %13, %cst_13 {dimension_numbers = #tpu.dot_dimension_numbers<[1], [0], [0], [1], [0, 0, 1, 1], [], []>} : vector<2x12xf32>, vector<12x32xf32>, vector<2x32xf32> -> vector<2x32xf32>
      %c0_14 = arith.constant 0 : index
      %c0_15 = arith.constant 0 : index
      %15 = vector.load %arg4[%c0_14, %c0_15] : memref<1x32xf32, #tpu.memory_space<vmem>>, vector<1x32xf32>
      %16 = vector.broadcast %15 : vector<1x32xf32> to vector<2x32xf32>
      %17 = arith.addf %14, %16 : vector<2x32xf32>
      %cst_16 = arith.constant 0.000000e+00 : f32
      %18 = vector.broadcast %cst_16 : f32 to vector<2x32xf32>
      %19 = arith.maximumf %17, %18 : vector<2x32xf32>
      %c0_17 = arith.constant 0 : index
      %c0_18 = arith.constant 0 : index
      %20 = vector.load %arg5[%c0_17, %c0_18] : memref<32x32xf32, #tpu.memory_space<vmem>>, vector<32x32xf32>
      %c0_19 = arith.constant 0 : index
      %c0_20 = arith.constant 0 : index
      %21 = vector.load %arg6[%c0_19, %c0_20] : memref<1x32xf32, #tpu.memory_space<vmem>>, vector<1x32xf32>
      %cst_21 = arith.constant dense<0.000000e+00> : vector<2x32xf32>
      %22 = tpu.matmul %19, %20, %cst_21 {dimension_numbers = #tpu.dot_dimension_numbers<[1], [0], [0], [1], [0, 0, 1, 1], [], []>} : vector<2x32xf32>, vector<32x32xf32>, vector<2x32xf32> -> vector<2x32xf32>
      %23 = vector.broadcast %21 : vector<1x32xf32> to vector<2x32xf32>
      %24 = arith.addf %22, %23 : vector<2x32xf32>
      %cst_22 = arith.constant 0.000000e+00 : f32
      %25 = vector.broadcast %cst_22 : f32 to vector<2x32xf32>
      %26 = arith.maximumf %24, %25 : vector<2x32xf32>
      %c0_23 = arith.constant 0 : index
      %c0_24 = arith.constant 0 : index
      %27 = vector.load %arg7[%c0_23, %c0_24] : memref<32x16xf32, #tpu.memory_space<vmem>>, vector<32x16xf32>
      %c0_25 = arith.constant 0 : index
      %c0_26 = arith.constant 0 : index
      %28 = vector.load %arg8[%c0_25, %c0_26] : memref<1x16xf32, #tpu.memory_space<vmem>>, vector<1x16xf32>
      %cst_27 = arith.constant dense<0.000000e+00> : vector<2x16xf32>
      %29 = tpu.matmul %26, %27, %cst_27 {dimension_numbers = #tpu.dot_dimension_numbers<[1], [0], [0], [1], [0, 0, 1, 1], [], []>} : vector<2x32xf32>, vector<32x16xf32>, vector<2x16xf32> -> vector<2x16xf32>
      %30 = vector.broadcast %28 : vector<1x16xf32> to vector<2x16xf32>
      %31 = arith.addf %29, %30 : vector<2x16xf32>
      %cst_28 = arith.constant 0.000000e+00 : f32
      %32 = vector.broadcast %cst_28 : f32 to vector<2x16xf32>
      %33 = arith.maximumf %31, %32 : vector<2x16xf32>
      %c0_29 = arith.constant 0 : index
      %c0_30 = arith.constant 0 : index
      %34 = vector.load %arg9[%c0_29, %c0_30] : memref<16x1xf32, #tpu.memory_space<vmem>>, vector<16x1xf32>
      %c0_31 = arith.constant 0 : index
      %c0_32 = arith.constant 0 : index
      %35 = vector.load %arg10[%c0_31, %c0_32] : memref<1x1xf32, #tpu.memory_space<vmem>>, vector<1x1xf32>
      %cst_33 = arith.constant dense<0.000000e+00> : vector<2x1xf32>
      %36 = tpu.matmul %33, %34, %cst_33 {dimension_numbers = #tpu.dot_dimension_numbers<[1], [0], [0], [1], [0, 0, 1, 1], [], []>} : vector<2x16xf32>, vector<16x1xf32>, vector<2x1xf32> -> vector<2x1xf32>
      %37 = vector.broadcast %35 : vector<1x1xf32> to vector<2x1xf32>
      %38 = arith.addf %36, %37 : vector<2x1xf32>
      %39 = vector.shape_cast %38 : vector<2x1xf32> to vector<2x1x1xf32>
      %c0_34 = arith.constant 0 : index
      %c0_35 = arith.constant 0 : index
      %c0_36 = arith.constant 0 : index
      %40 = vector.load %arg11[%c0_34, %c0_35, %c0_36] : memref<2x1x1xf32, #tpu.memory_space<vmem>>, vector<2x1x1xf32>
      tpu.vector_store %arg11[%c0_34, %c0_35, %c0_36], %39 {strides = array<i32>} : memref<2x1x1xf32, #tpu.memory_space<vmem>>, vector<2x1x1xf32>,
    } else {
    }
    return
  }
  func.func @transform_0(%arg0: i32, %arg1: i32) -> (i32, i32, i32) {
    %c0_i32 = arith.constant 0 : i32
    %c0_i32_0 = arith.constant 0 : i32
    return %arg0, %c0_i32, %arg1 : i32, i32, i32
  }
  func.func @transform_1(%arg0: i32, %arg1: i32) -> (i32, i32) {
    %c0_i32 = arith.constant 0 : i32
    %c0_i32_0 = arith.constant 0 : i32
    %c0_i32_1 = arith.constant 0 : i32
    return %c0_i32, %c0_i32_0 : i32, i32
  }
  func.func @transform_2(%arg0: i32, %arg1: i32) -> (i32, i32) {
    %c0_i32 = arith.constant 0 : i32
    %c0_i32_0 = arith.constant 0 : i32
    %c0_i32_1 = arith.constant 0 : i32
    return %c0_i32, %c0_i32_0 : i32, i32
  }
  func.func @transform_3(%arg0: i32, %arg1: i32) -> (i32, i32) {
    %c0_i32 = arith.constant 0 : i32
    %c0_i32_0 = arith.constant 0 : i32
    %c0_i32_1 = arith.constant 0 : i32
    return %c0_i32, %c0_i32_0 : i32, i32
  }
  func.func @transform_4(%arg0: i32, %arg1: i32) -> (i32, i32) {
    %c0_i32 = arith.constant 0 : i32
    %c0_i32_0 = arith.constant 0 : i32
    %c0_i32_1 = arith.constant 0 : i32
    return %c0_i32, %c0_i32_0 : i32, i32
  }
  func.func @transform_5(%arg0: i32, %arg1: i32) -> (i32, i32) {
    %c0_i32 = arith.constant 0 : i32
    %c0_i32_0 = arith.constant 0 : i32
    %c0_i32_1 = arith.constant 0 : i32
    return %c0_i32, %c0_i32_0 : i32, i32
  }
  func.func @transform_6(%arg0: i32, %arg1: i32) -> (i32, i32) {
    %c0_i32 = arith.constant 0 : i32
    %c0_i32_0 = arith.constant 0 : i32
    %c0_i32_1 = arith.constant 0 : i32
    return %c0_i32, %c0_i32_0 : i32, i32
  }
  func.func @transform_7(%arg0: i32, %arg1: i32) -> (i32, i32) {
    %c0_i32 = arith.constant 0 : i32
    %c0_i32_0 = arith.constant 0 : i32
    %c0_i32_1 = arith.constant 0 : i32
    return %c0_i32, %c0_i32_0 : i32, i32
  }
  func.func @transform_8(%arg0: i32, %arg1: i32) -> (i32, i32) {
    %c0_i32 = arith.constant 0 : i32
    %c0_i32_0 = arith.constant 0 : i32
    %c0_i32_1 = arith.constant 0 : i32
    return %c0_i32, %c0_i32_0 : i32, i32
  }
  func.func @transform_9(%arg0: i32, %arg1: i32) -> (i32, i32, i32) {
    %c0_i32 = arith.constant 0 : i32
    %c0_i32_0 = arith.constant 0 : i32
    %c0_i32_1 = arith.constant 0 : i32
    return %arg0, %c0_i32, %c0_i32_0 : i32, i32, i32
  }
}

</mosaic_0001>

<llo_original>
// kernel: tpu_custom_call.1
$region0: #{tpu_custom_call.1}
  #allocation0 [shape = 'u32[]', space=smem, size = 0x4, offset = 0x4, fixed_abs, tag = 'smem constant byte address 0x4 - core index']
  #allocation1 [shape = 'u32[144,128]{1,0:T(1,128)}', space=vmem, size = 0x12000, scoped, tag = 'internal scratch']
  #allocation2 [shape = 'f32[2,12]{1,0:T(2,128)}', space=vmem, size = 0x400, scoped, tag = 'scratch operand']
  #allocation3 [shape = 'f32[1,1]{1,0:T(1,128)S(1)}', space=vmem, size = 0x200, scoped, tag = 'scoped memory for tpu_custom_call.1']
  %s0 = inlined_call_operand.vmem [shape: bf16[2,12,256], index: 0, kind: input, shape index: {}]
  %s1 = inlined_call_operand.vmem [shape: f32[12,32], index: 1, kind: input, shape index: {}]
  %s2 = inlined_call_operand.vmem [shape: f32[1,32], index: 2, kind: input, shape index: {}]
  %s3 = inlined_call_operand.vmem [shape: f32[32,32], index: 3, kind: input, shape index: {}]
  %s4 = inlined_call_operand.vmem [shape: f32[1,32], index: 4, kind: input, shape index: {}]
  %s5 = inlined_call_operand.vmem [shape: f32[32,16], index: 5, kind: input, shape index: {}]
  %s6 = inlined_call_operand.vmem [shape: f32[1,16], index: 6, kind: input, shape index: {}]
  %s7 = inlined_call_operand.vmem [shape: f32[16,1], index: 7, kind: input, shape index: {}]
  %s8 = inlined_call_operand.<no memory space> [shape: f32[1,1], index: 8, kind: input, shape index: {}]
  %s9 = inlined_call_operand.vmem [shape: f32[2,1,1], index: 9, kind: output, shape index: {}]
  %s10 = sld [smem:[#allocation0]]
  $region54: #{tpu_custom_call.1} parent=0
    _
  %s12 = ssub.s32 1, %s10
  %s13 = scalar_select 0, %s12, %s10
  %v14 = vstv %s8
  %15 = vst [vmem:[#allocation3] sm:$0x1] %v14
  // Predicated region
  $region2: #{tpu_custom_call.1} parent=0 // pred_check
    _
  $region3: #{tpu_custom_call.1} parent=0 // pred_check_branch
    %17 = sbr.rel (0) target = $region5
  $region4: #{tpu_custom_call.1} parent=0 // pred_region
    _
  $region5: #{tpu_custom_call.1} parent=0 // pred_fallthru
    _
  // Predicated region
  $region6: #{tpu_custom_call.1} parent=0 // pred_check
    _
  $region7: #{tpu_custom_call.1} parent=0 // pred_check_branch
    %19 = sbr.rel (0) target = $region9
  $region8: #{tpu_custom_call.1} parent=0 // pred_region
    _
  $region9: #{tpu_custom_call.1} parent=0 // pred_fallthru
    _
  // Predicated region
  $region10: #{tpu_custom_call.1} parent=0 // pred_check
    _
  $region11: #{tpu_custom_call.1} parent=0 // pred_check_branch
    %21 = sbr.rel (0) target = $region13
  $region12: #{tpu_custom_call.1} parent=0 // pred_region
    _
  $region13: #{tpu_custom_call.1} parent=0 // pred_fallthru
    _
  // Predicated region
  $region14: #{tpu_custom_call.1} parent=0 // pred_check
    _
  $region15: #{tpu_custom_call.1} parent=0 // pred_check_branch
    %23 = sbr.rel (0) target = $region17
  $region16: #{tpu_custom_call.1} parent=0 // pred_region
    _
  $region17: #{tpu_custom_call.1} parent=0 // pred_fallthru
    _
  // Predicated region
  $region18: #{tpu_custom_call.1} parent=0 // pred_check
    _
  $region19: #{tpu_custom_call.1} parent=0 // pred_check_branch
    %25 = sbr.rel (0) target = $region21
  $region20: #{tpu_custom_call.1} parent=0 // pred_region
    _
  $region21: #{tpu_custom_call.1} parent=0 // pred_fallthru
    _
  // Predicated region
  $region22: #{tpu_custom_call.1} parent=0 // pred_check
    _
  $region23: #{tpu_custom_call.1} parent=0 // pred_check_branch
    %27 = sbr.rel (0) target = $region25
  $region24: #{tpu_custom_call.1} parent=0 // pred_region
    _
  $region25: #{tpu_custom_call.1} parent=0 // pred_fallthru
    _
  // Predicated region
  $region26: #{tpu_custom_call.1} parent=0 // pred_check
    _
  $region27: #{tpu_custom_call.1} parent=0 // pred_check_branch
    %29 = sbr.rel (0) target = $region29
  $region28: #{tpu_custom_call.1} parent=0 // pred_region
    _
  $region29: #{tpu_custom_call.1} parent=0 // pred_fallthru
    _
  // Predicated region
  $region30: #{tpu_custom_call.1} parent=0 // pred_check
    _
  $region31: #{tpu_custom_call.1} parent=0 // pred_check_branch
    %31 = sbr.rel (0) target = $region33
  $region32: #{tpu_custom_call.1} parent=0 // pred_region
    _
  $region33: #{tpu_custom_call.1} parent=0 // pred_fallthru
    _
  // Predicated region
  $region34: #{tpu_custom_call.1} parent=0 // pred_check
    _
  $region35: #{tpu_custom_call.1} parent=0 // pred_check_branch
    %33 = sbr.rel (0) target = $region37
  $region36: #{tpu_custom_call.1} parent=0 // pred_region
    _
  $region37: #{tpu_custom_call.1} parent=0 // pred_fallthru
    _
  %p34 = scmp.eq.s32.totalorder 0, 0
  // Predicated region
  $region38: #{tpu_custom_call.1} parent=0 // pred_check
    %p35 = pneg %p34
  $region39: #{tpu_custom_call.1} parent=0 // pred_check_branch
    %37 = sbr.rel (%p35) target = $region41
  $region40: #{tpu_custom_call.1} parent=0 // pred_region
    %vm38 = vcmask 91136
    %39 = vst.msk [vmem:[#allocation2] sm:$0x3] %vm38, 0.0
  $region41: #{tpu_custom_call.1} parent=0 // pred_fallthru
    _
  %v40 = vld [vmem:[#allocation2] sm:$0x3]
  %v41 = vld [vmem:[%s0] sm:$0xff]
  %v42 = vld [vmem:[%s0 + $0x8] sm:$0x33]
  %v43 = vld [vmem:[%s0 + $0x10] sm:$0xff]
  %v44 = vld [vmem:[%s0 + $0x18] sm:$0x33]
  %v45 = vunpack.c.l.bf16 %v41
  %v46 = vunpack.c.h.bf16 %v41
  %v47 = vunpack.c.l.bf16 %v42
  %v48 = vunpack.c.h.bf16 %v42
  %v49 = vunpack.c.l.bf16 %v43
  %v50 = vunpack.c.h.bf16 %v43
  %v51 = vunpack.c.l.bf16 %v44
  %v52 = vunpack.c.h.bf16 %v44
  %v53 = vadd.f32 %v45, %v46
  %54 = vadd.xlane.f32.xlu0 %v53
  %v55 = vpop.xlane.xlu0 %54
  %vm56 = vcmask 1043456
  %v57 = vsel %vm56, %v47, 0.0
  %v58 = vsel %vm56, %v48, 0.0
  %v59 = vadd.f32 %v57, %v58
  %60 = vadd.xlane.f32.xlu0 %v59
  %v61 = vpop.xlane.xlu0 %60
  %v62 = vadd.f32 %v49, %v50
  %63 = vadd.xlane.f32.xlu0 %v62
  %v64 = vpop.xlane.xlu0 %63
  %v65 = vsel %vm56, %v51, 0.0
  %v66 = vsel %vm56, %v52, 0.0
  %v67 = vadd.f32 %v65, %v66
  %68 = vadd.xlane.f32.xlu0 %v67
  %v69 = vpop.xlane.xlu0 %68
  %v74 = vlaneseq
  %v75 = vand.u32 %v74, 127
  %v76 = vlaneseq
  %v77 = vshrl.u32 %v76, 7
  %v78 = vsub.s32 %v75, %v77
  %v79 = vrot.slane %v55, %v78
  %v80 = vadd.s32 %v75, 4294967288
  %v81 = vlaneseq
  %v82 = vshrl.u32 %v81, 7
  %v83 = vsub.s32 %v80, %v82
  %v84 = vrot.slane %v61, %v83
  %vm85 = vcmask 130112
  %v86 = vsel %vm85, %v84, %v79
  %v87 = vlaneseq
  %v88 = vshrl.u32 %v87, 7
  %v89 = vsub.s32 %v75, %v88
  %v90 = vrot.slane %v64, %v89
  %v91 = vlaneseq
  %v92 = vshrl.u32 %v91, 7
  %v93 = vsub.s32 %v80, %v92
  %v94 = vrot.slane %v69, %v93
  %v95 = vsel %vm85, %v94, %v90
  %vm96 = vcmask 1041409
  %v97 = vsel %vm96, %v95, %v86
  %v99 = vadd.f32 %v40, %v97
  %vm100 = vcmask 91136
  %101 = vst.msk [vmem:[#allocation2] sm:$0x3] %vm100, %v99
  // Predicated region
  $region42: #{tpu_custom_call.1} parent=0 // pred_check
    %p102 = pneg %p34
  $region43: #{tpu_custom_call.1} parent=0 // pred_check_branch
    %104 = sbr.rel (%p102) target = $region45
  $region44: #{tpu_custom_call.1} parent=0 // pred_region
    %v105 = vld [vmem:[#allocation2] sm:$0x3]
    %v106 = vld [vmem:[%s1] sm:$0xff]
    %v107 = vld [vmem:[%s1 + $0x8] sm:$0xf]
    %v108 = vld [vmem:[%s2] sm:$0x1]
    %v110 = vlaneseq
    %v111 = vshrl.u32 %v110, 7
    %v112 = vsub.s32 0, %v111
    %v113 = vrot.slane %v108, %v112
    %vm115 = vcmask 97280
    %v117 = vsel %vm115, %v105, 0
    %v120 = vsel %vm56, %v107, 0
    %122 = vmatprep.subr.mxu0 0.0
    %123 = vmatpush1.msra.mxu0 %v106
    %124 = vmatprep.subr.mxu0 0.0
    %125 = vmatpush1.msra.mxu0 %v120
    %126 = vmatprep.subr.mxu0 0.0
    %127 = vmatpush1.msra.mxu0 0.0
    %128 = vmatprep.subr.mxu0 0.0
    %129 = vmatpush1.msra.mxu0 0.0
    %130 = vmatprep.subr.mxu0 0.0
    %131 = vmatpush1.msra.mxu0 0.0
    %132 = vmatprep.subr.mxu0 0.0
    %133 = vmatpush1.msra.mxu0 0.0
    %134 = vmatprep.subr.mxu0 0.0
    %135 = vmatpush1.msra.mxu0 0.0
    %136 = vmatprep.subr.mxu0 0.0
    %137 = vmatpush1.msra.mxu0 0.0
    %138 = vmatprep.subr.mxu0 0.0
    %139 = vmatpush1.msra.mxu0 0.0
    %140 = vmatprep.subr.mxu0 0.0
    %141 = vmatpush1.msra.mxu0 0.0
    %142 = vmatprep.subr.mxu0 0.0
    %143 = vmatpush1.msra.mxu0 0.0
    %144 = vmatprep.subr.mxu0 0.0
    %145 = vmatpush1.msra.mxu0 0.0
    %146 = vmatprep.subr.mxu0 0.0
    %147 = vmatpush1.msra.mxu0 0.0
    %148 = vmatprep.subr.mxu0 0.0
    %149 = vmatpush1.msra.mxu0 0.0
    %150 = vmatprep.subr.mxu0 0.0
    %151 = vmatpush1.msra.mxu0 0.0
    %152 = vmatprep.subr.mxu0 0.0
    %153 = vmatpush1.msra.mxu0 0.0
    %154 = vmatprep.subr.mxu0 0.0
    %155 = vmatpush1.msra.mxu0 0.0
    %156 = vmatprep.subr.mxu0 0.0
    %157 = vmatpush1.msra.mxu0 0.0
    %158 = vmatprep.subr.mxu0 0.0
    %159 = vmatpush1.msra.mxu0 0.0
    %160 = vmatprep.subr.mxu0 0.0
    %161 = vmatpush1.msra.mxu0 0.0
    %162 = vmatprep.subr.mxu0 0.0
    %163 = vmatpush1.msra.mxu0 0.0
    %164 = vmatprep.subr.mxu0 0.0
    %165 = vmatpush1.msra.mxu0 0.0
    %166 = vmatprep.subr.mxu0 0.0
    %167 = vmatpush1.msra.mxu0 0.0
    %168 = vmatprep.subr.mxu0 0.0
    %169 = vmatpush1.msra.mxu0 0.0
    %170 = vmatprep.subr.mxu0 0.0
    %171 = vmatpush1.msra.mxu0 0.0
    %172 = vmatprep.subr.mxu0 0.0
    %173 = vmatpush1.msra.mxu0 0.0
    %174 = vmatprep.subr.mxu0 0.0
    %175 = vmatpush1.msra.mxu0 0.0
    %176 = vmatprep.subr.mxu0 0.0
    %177 = vmatpush1.msra.mxu0 0.0
    %178 = vmatprep.subr.mxu0 0.0
    %179 = vmatpush1.msra.mxu0 0.0
    %180 = vmatprep.subr.mxu0 0.0
    %181 = vmatpush1.msra.mxu0 0.0
    %182 = vmatprep.subr.mxu0 0.0
    %183 = vmatpush1.msra.mxu0 0.0
    %184 = vmatprep.subr.mxu0 0.0
    %185 = vmatpush1.msra.mxu0 0.0
    %186 = vmatprep.mubr.f32.mxu0 0.0
    %187 = vmatmul.mubr.f32.gmra.mrb[0].mxu0 %v117
    %v188 = vpop.f32.mrb[0].mxu0
    %v189 = vadd.f32 %v113, %v188
    %v190 = vpop.f32.mrb[0].mxu0
    %191 = vdwg.mxu0
    %v192 = vmax.f32 %v189, 0.0
    %v193 = vld [vmem:[%s3] sm:$0xff]
    %v194 = vld [vmem:[%s3 + $0x8] sm:$0xff]
    %v195 = vld [vmem:[%s3 + $0x10] sm:$0xff]
    %v196 = vld [vmem:[%s3 + $0x18] sm:$0xff]
    %v197 = vld [vmem:[%s4] sm:$0x1]
    %v199 = vlaneseq
    %v200 = vshrl.u32 %v199, 7
    %v201 = vsub.s32 0, %v200
    %v202 = vrot.slane %v197, %v201
    %vm204 = vcmask 261120
    %v206 = vsel %vm204, %v192, 0
    %208 = vmatprep.subr.mxu0 0.0
    %209 = vmatpush1.msra.mxu0 %v193
    %210 = vmatprep.subr.mxu0 0.0
    %211 = vmatpush1.msra.mxu0 %v194
    %212 = vmatprep.subr.mxu0 0.0
    %213 = vmatpush1.msra.mxu0 %v195
    %214 = vmatprep.subr.mxu0 0.0
    %215 = vmatpush1.msra.mxu0 %v196
    %216 = vmatprep.subr.mxu0 0.0
    %217 = vmatpush1.msra.mxu0 0.0
    %218 = vmatprep.subr.mxu0 0.0
    %219 = vmatpush1.msra.mxu0 0.0
    %220 = vmatprep.subr.mxu0 0.0
    %221 = vmatpush1.msra.mxu0 0.0
    %222 = vmatprep.subr.mxu0 0.0
    %223 = vmatpush1.msra.mxu0 0.0
    %224 = vmatprep.subr.mxu0 0.0
    %225 = vmatpush1.msra.mxu0 0.0
    %226 = vmatprep.subr.mxu0 0.0
    %227 = vmatpush1.msra.mxu0 0.0
    %228 = vmatprep.subr.mxu0 0.0
    %229 = vmatpush1.msra.mxu0 0.0
    %230 = vmatprep.subr.mxu0 0.0
    %231 = vmatpush1.msra.mxu0 0.0
    %232 = vmatprep.subr.mxu0 0.0
    %233 = vmatpush1.msra.mxu0 0.0
    %234 = vmatprep.subr.mxu0 0.0
    %235 = vmatpush1.msra.mxu0 0.0
    %236 = vmatprep.subr.mxu0 0.0
    %237 = vmatpush1.msra.mxu0 0.0
    %238 = vmatprep.subr.mxu0 0.0
    %239 = vmatpush1.msra.mxu0 0.0
    %240 = vmatprep.subr.mxu0 0.0
    %241 = vmatpush1.msra.mxu0 0.0
    %242 = vmatprep.subr.mxu0 0.0
    %243 = vmatpush1.msra.mxu0 0.0
    %244 = vmatprep.subr.mxu0 0.0
    %245 = vmatpush1.msra.mxu0 0.0
    %246 = vmatprep.subr.mxu0 0.0
    %247 = vmatpush1.msra.mxu0 0.0
    %248 = vmatprep.subr.mxu0 0.0
    %249 = vmatpush1.msra.mxu0 0.0
    %250 = vmatprep.subr.mxu0 0.0
    %251 = vmatpush1.msra.mxu0 0.0
    %252 = vmatprep.subr.mxu0 0.0
    %253 = vmatpush1.msra.mxu0 0.0
    %254 = vmatprep.subr.mxu0 0.0
    %255 = vmatpush1.msra.mxu0 0.0
    %256 = vmatprep.subr.mxu0 0.0
    %257 = vmatpush1.msra.mxu0 0.0
    %258 = vmatprep.subr.mxu0 0.0
    %259 = vmatpush1.msra.mxu0 0.0
    %260 = vmatprep.subr.mxu0 0.0
    %261 = vmatpush1.msra.mxu0 0.0
    %262 = vmatprep.subr.mxu0 0.0
    %263 = vmatpush1.msra.mxu0 0.0
    %264 = vmatprep.subr.mxu0 0.0
    %265 = vmatpush1.msra.mxu0 0.0
    %266 = vmatprep.subr.mxu0 0.0
    %267 = vmatpush1.msra.mxu0 0.0
    %268 = vmatprep.subr.mxu0 0.0
    %269 = vmatpush1.msra.mxu0 0.0
    %270 = vmatprep.subr.mxu0 0.0
    %271 = vmatpush1.msra.mxu0 0.0
    %272 = vmatprep.mubr.f32.mxu0 0.0
    %273 = vmatmul.mubr.f32.gmra.mrb[0].mxu0 %v206
    %v274 = vpop.f32.mrb[0].mxu0
    %v275 = vadd.f32 %v202, %v274
    %v276 = vpop.f32.mrb[0].mxu0
    %277 = vdwg.mxu0
    %v278 = vmax.f32 %v275, 0.0
    %v279 = vld [vmem:[%s5] sm:$0xff]
    %v280 = vld [vmem:[%s5 + $0x8] sm:$0xff]
    %v281 = vld [vmem:[%s5 + $0x10] sm:$0xff]
    %v282 = vld [vmem:[%s5 + $0x18] sm:$0xff]
    %v283 = vld [vmem:[%s6] sm:$0x1]
    %v285 = vlaneseq
    %v286 = vshrl.u32 %v285, 7
    %v287 = vsub.s32 0, %v286
    %v288 = vrot.slane %v283, %v287
    %v291 = vsel %vm204, %v278, 0
    %293 = vmatprep.subr.mxu0 0.0
    %294 = vmatpush1.msra.mxu0 %v279
    %295 = vmatprep.subr.mxu0 0.0
    %296 = vmatpush1.msra.mxu0 %v280
    %297 = vmatprep.subr.mxu0 0.0
    %298 = vmatpush1.msra.mxu0 %v281
    %299 = vmatprep.subr.mxu0 0.0
    %300 = vmatpush1.msra.mxu0 %v282
    %301 = vmatprep.subr.mxu0 0.0
    %302 = vmatpush1.msra.mxu0 0.0
    %303 = vmatprep.subr.mxu0 0.0
    %304 = vmatpush1.msra.mxu0 0.0
    %305 = vmatprep.subr.mxu0 0.0
    %306 = vmatpush1.msra.mxu0 0.0
    %307 = vmatprep.subr.mxu0 0.0
    %308 = vmatpush1.msra.mxu0 0.0
    %309 = vmatprep.subr.mxu0 0.0
    %310 = vmatpush1.msra.mxu0 0.0
    %311 = vmatprep.subr.mxu0 0.0
    %312 = vmatpush1.msra.mxu0 0.0
    %313 = vmatprep.subr.mxu0 0.0
    %314 = vmatpush1.msra.mxu0 0.0
    %315 = vmatprep.subr.mxu0 0.0
    %316 = vmatpush1.msra.mxu0 0.0
    %317 = vmatprep.subr.mxu0 0.0
    %318 = vmatpush1.msra.mxu0 0.0
    %319 = vmatprep.subr.mxu0 0.0
    %320 = vmatpush1.msra.mxu0 0.0
    %321 = vmatprep.subr.mxu0 0.0
    %322 = vmatpush1.msra.mxu0 0.0
    %323 = vmatprep.subr.mxu0 0.0
    %324 = vmatpush1.msra.mxu0 0.0
    %325 = vmatprep.subr.mxu0 0.0
    %326 = vmatpush1.msra.mxu0 0.0
    %327 = vmatprep.subr.mxu0 0.0
    %328 = vmatpush1.msra.mxu0 0.0
    %329 = vmatprep.subr.mxu0 0.0
    %330 = vmatpush1.msra.mxu0 0.0
    %331 = vmatprep.subr.mxu0 0.0
    %332 = vmatpush1.msra.mxu0 0.0
    %333 = vmatprep.subr.mxu0 0.0
    %334 = vmatpush1.msra.mxu0 0.0
    %335 = vmatprep.subr.mxu0 0.0
    %336 = vmatpush1.msra.mxu0 0.0
    %337 = vmatprep.subr.mxu0 0.0
    %338 = vmatpush1.msra.mxu0 0.0
    %339 = vmatprep.subr.mxu0 0.0
    %340 = vmatpush1.msra.mxu0 0.0
    %341 = vmatprep.subr.mxu0 0.0
    %342 = vmatpush1.msra.mxu0 0.0
    %343 = vmatprep.subr.mxu0 0.0
    %344 = vmatpush1.msra.mxu0 0.0
    %345 = vmatprep.subr.mxu0 0.0
    %346 = vmatpush1.msra.mxu0 0.0
    %347 = vmatprep.subr.mxu0 0.0
    %348 = vmatpush1.msra.mxu0 0.0
    %349 = vmatprep.subr.mxu0 0.0
    %350 = vmatpush1.msra.mxu0 0.0
    %351 = vmatprep.subr.mxu0 0.0
    %352 = vmatpush1.msra.mxu0 0.0
    %353 = vmatprep.subr.mxu0 0.0
    %354 = vmatpush1.msra.mxu0 0.0
    %355 = vmatprep.subr.mxu0 0.0
    %356 = vmatpush1.msra.mxu0 0.0
    %357 = vmatprep.mubr.f32.mxu0 0.0
    %358 = vmatmul.mubr.f32.gmra.mrb[0].mxu0 %v291
    %v359 = vpop.f32.mrb[0].mxu0
    %v360 = vadd.f32 %v288, %v359
    %v361 = vpop.f32.mrb[0].mxu0
    %362 = vdwg.mxu0
    %v363 = vmax.f32 %v360, 0.0
    %v364 = vld [vmem:[%s7] sm:$0xff]
    %v365 = vld [vmem:[%s7 + $0x8] sm:$0xff]
    %v366 = vld [vmem:[#allocation3] sm:$0x1]
    %v368 = vlaneseq
    %v369 = vshrl.u32 %v368, 7
    %v370 = vsub.s32 0, %v369
    %v371 = vrot.slane %v366, %v370
    %vm373 = vcmask 130048
    %v375 = vsel %vm373, %v363, 0
    %377 = vmatprep.subr.mxu0 0.0
    %378 = vmatpush1.msra.mxu0 %v364
    %379 = vmatprep.subr.mxu0 0.0
    %380 = vmatpush1.msra.mxu0 %v365
    %381 = vmatprep.subr.mxu0 0.0
    %382 = vmatpush1.msra.mxu0 0.0
    %383 = vmatprep.subr.mxu0 0.0
    %384 = vmatpush1.msra.mxu0 0.0
    %385 = vmatprep.subr.mxu0 0.0
    %386 = vmatpush1.msra.mxu0 0.0
    %387 = vmatprep.subr.mxu0 0.0
    %388 = vmatpush1.msra.mxu0 0.0
    %389 = vmatprep.subr.mxu0 0.0
    %390 = vmatpush1.msra.mxu0 0.0
    %391 = vmatprep.subr.mxu0 0.0
    %392 = vmatpush1.msra.mxu0 0.0
    %393 = vmatprep.subr.mxu0 0.0
    %394 = vmatpush1.msra.mxu0 0.0
    %395 = vmatprep.subr.mxu0 0.0
    %396 = vmatpush1.msra.mxu0 0.0
    %397 = vmatprep.subr.mxu0 0.0
    %398 = vmatpush1.msra.mxu0 0.0
    %399 = vmatprep.subr.mxu0 0.0
    %400 = vmatpush1.msra.mxu0 0.0
    %401 = vmatprep.subr.mxu0 0.0
    %402 = vmatpush1.msra.mxu0 0.0
    %403 = vmatprep.subr.mxu0 0.0
    %404 = vmatpush1.msra.mxu0 0.0
    %405 = vmatprep.subr.mxu0 0.0
    %406 = vmatpush1.msra.mxu0 0.0
    %407 = vmatprep.subr.mxu0 0.0
    %408 = vmatpush1.msra.mxu0 0.0
    %409 = vmatprep.subr.mxu0 0.0
    %410 = vmatpush1.msra.mxu0 0.0
    %411 = vmatprep.subr.mxu0 0.0
    %412 = vmatpush1.msra.mxu0 0.0
    %413 = vmatprep.subr.mxu0 0.0
    %414 = vmatpush1.msra.mxu0 0.0
    %415 = vmatprep.subr.mxu0 0.0
    %416 = vmatpush1.msra.mxu0 0.0
    %417 = vmatprep.subr.mxu0 0.0
    %418 = vmatpush1.msra.mxu0 0.0
    %419 = vmatprep.subr.mxu0 0.0
    %420 = vmatpush1.msra.mxu0 0.0
    %421 = vmatprep.subr.mxu0 0.0
    %422 = vmatpush1.msra.mxu0 0.0
    %423 = vmatprep.subr.mxu0 0.0
    %424 = vmatpush1.msra.mxu0 0.0
    %425 = vmatprep.subr.mxu0 0.0
    %426 = vmatpush1.msra.mxu0 0.0
    %427 = vmatprep.subr.mxu0 0.0
    %428 = vmatpush1.msra.mxu0 0.0
    %429 = vmatprep.subr.mxu0 0.0
    %430 = vmatpush1.msra.mxu0 0.0
    %431 = vmatprep.subr.mxu0 0.0
    %432 = vmatpush1.msra.mxu0 0.0
    %433 = vmatprep.subr.mxu0 0.0
    %434 = vmatpush1.msra.mxu0 0.0
    %435 = vmatprep.subr.mxu0 0.0
    %436 = vmatpush1.msra.mxu0 0.0
    %437 = vmatprep.subr.mxu0 0.0
    %438 = vmatpush1.msra.mxu0 0.0
    %439 = vmatprep.subr.mxu0 0.0
    %440 = vmatpush1.msra.mxu0 0.0
    %441 = vmatprep.mubr.f32.mxu0 0.0
    %442 = vmatmul.mubr.f32.gmra.mrb[0].mxu0 %v375
    %v443 = vpop.f32.mrb[0].mxu0
    %v444 = vadd.f32 %v371, %v443
    %v445 = vpop.f32.mrb[0].mxu0
    %446 = vdwg.mxu0
    %v449 = vunpack.c.l.s4 1966171168
    %v450 = vunpack.c.0.s8 %v449
    %v451 = vlaneseq
    %v452 = vshrl.u32 %v451, 7
    %v453 = vsub.s32 %v450, %v452
    %v454 = vrot.slane %v444, %v453
    %v455 = vcombine.high %v454, %v454
    %v457 = vunpack.c.l.s4 1966171168
    %v458 = vunpack.c.0.s8 %v457
    %v459 = vlaneseq
    %v460 = vshrl.u32 %v459, 7
    %v461 = vsub.s32 %v458, %v460
    %v462 = vrot.slane %v454, %v461
    %v464 = vunpack.c.l.s4 1966171168
    %v465 = vunpack.c.0.s8 %v464
    %v466 = vlaneseq
    %v467 = vshrl.u32 %v466, 7
    %v468 = vsub.s32 %v465, %v467
    %v469 = vrot.slane %v455, %v468
    %vm472 = vcmask 0
    %473 = vst.msk [vmem:[%s9] sm:$0x1] %vm472, %v462
    %474 = vst.msk [vmem:[%s9 + $0x1] sm:$0x1] %vm472, %v469
  $region45: #{tpu_custom_call.1} parent=0 // pred_fallthru
    _
  // Predicated region
  $region46: #{tpu_custom_call.1} parent=0 // pred_check
    _
  $region47: #{tpu_custom_call.1} parent=0 // pred_check_branch
    %476 = sbr.rel (0) target = $region49
  $region48: #{tpu_custom_call.1} parent=0 // pred_region
    _
  $region49: #{tpu_custom_call.1} parent=0 // pred_fallthru
    _
  // Predicated region
  $region50: #{tpu_custom_call.1} parent=0 // pred_check
    _
  $region51: #{tpu_custom_call.1} parent=0 // pred_check_branch
    %478 = sbr.rel (0) target = $region53
  $region52: #{tpu_custom_call.1} parent=0 // pred_region
    _
  $region53: #{tpu_custom_call.1} parent=0 // pred_fallthru
    _

</llo_original>
